<compile_context>
chip_gen: v7x
topology: tpu7x:2x2x1
jax: 0.10.0
libtpu: 0.0.40
codegen_flags: <defaults>
</compile_context>

<pallas_src>
import functools

import jax
import jax.numpy as jnp
from jax.experimental import pallas as pl
from jax.experimental.pallas import tpu as pltpu

ALPHA = 0.2          # LeakyReLU negative slope
NEG_BIG = -9e15      # mask value used by the reference implementation only


def _round_up(x, m):
    return ((x + m - 1) // m) * m


def _pick_block(target, total):
    """Largest multiple of 128 that is <= target and divides `total` (total % 128 == 0)."""
    b = max(128, (min(target, total) // 128) * 128)
    while total % b:
        b -= 128
    return b


# --------------------------------------------------------------------------- #
# Kernel 1: augmented projection  h @ [W | W@a1 | W@a2]                        #
# --------------------------------------------------------------------------- #
def _proj_kernel(h_ref, waug_ref, whaug_ref, s12_ref, s2t_ref, *, fout_p):
    # Single bf16 MXU matmul computes Wh and both attention projections at once.
    out = jnp.dot(h_ref[...], waug_ref[...], preferred_element_type=jnp.float32)
    bm = out.shape[0]

    # [Wh | 1 | 0 ...] : the ones column at lane `fout_p` lets kernel 2 obtain
    # the softmax denominator l from the same MXU matmul that accumulates att@Wh.
    whaug_ref[:, :fout_p] = out[:, :fout_p].astype(whaug_ref.dtype)
    lane = jax.lax.broadcasted_iota(jnp.int32, (bm, 128), 1)
    whaug_ref[:, fout_p:] = (lane == 0).astype(whaug_ref.dtype)

    # Attention-score chunk: lane 0 = Wh.a1 (s1), lane 1 = Wh.a2 (s2).
    s_chunk = out[:, fout_p:]                              # (bm, 128), f32
    s12_ref[...] = s_chunk                                 # column layout (s1 per row)
    # Lane-dense row layout for s2: aligned (bm,128)->(128,bm) XLU transpose,
    # keep first 8 sublanes.  Removes the wrapper-side strided-gather pass.
    s2t_ref[...] = jnp.transpose(s_chunk, (1, 0))[:8, :]   # (8, bm)


# --------------------------------------------------------------------------- #
# Kernel 2: masked online softmax + att @ Wh + ELU                             #
# --------------------------------------------------------------------------- #
def _attn_kernel(s12_ref, s2t_ref, adj_ref, wh_ref, out_ref, m_sc,
                 *, alpha, fout_p, bk, wh_resident):
    j = pl.program_id(1)

    @pl.when(j == 0)
    def _init():
        m_sc[...] = jnp.full_like(m_sc, -jnp.inf)
        out_ref[...] = jnp.zeros_like(out_ref)

    s1 = s12_ref[:, 0:1]                       # (bm, 1)  Wh_i . a[:F]   (ref slice)
    s2 = s2t_ref[1:2, :]                       # (1, bk)  Wh_j . a[F:]
    e = s1 + s2                                # (bm, bk) attention logits
    # LeakyReLU(alpha) == max(e, alpha*e) for 0 < alpha < 1 (one VALU max, no select).
    e = jnp.maximum(e, alpha * e)

    # Online (flash-style) softmax.  The running max is taken over the *unmasked*
    # logits (a valid upper bound, so the math stays exact); the adjacency mask is
    # applied as a post-exp bf16 multiply — no where/select, no NEG_BIG broadcast,
    # no int8->f32 cast on the N^2 hot path.
    m_prev = m_sc[...]
    m_new = jnp.maximum(m_prev, jnp.max(e, axis=1, keepdims=True))
    corr = jnp.exp(m_prev - m_new)             # == 0 on the first tile (m_prev = -inf)
    p = jnp.exp(e - m_new).astype(wh_ref.dtype) * adj_ref[...].astype(wh_ref.dtype)

    if wh_resident:
        # Wh resident in VMEM: slice the current column tile in-kernel.
        wh_blk = wh_ref[pl.ds(pl.multiple_of(j * bk, 128), bk), :]
    else:
        wh_blk = wh_ref[...]

    # One MXU matmul yields both the value accumulation (lanes [0, fout_p)) and the
    # softmax denominator l (the ones column at lane fout_p).  Accumulate straight
    # into the resident output block (no separate acc scratch).
    out_ref[...] = corr * out_ref[...] + jnp.dot(
        p, wh_blk, preferred_element_type=jnp.float32)
    m_sc[...] = m_new

    # TODO(synk): training-mode attention dropout (pltpu.prng_seed / prng_random_bits)
    #             is not implemented; eval-mode (identity) semantics only.

    @pl.when(j == pl.num_programs(1) - 1)
    def _finalize():
        acc = out_ref[...]
        # Rows with no unmasked neighbour (here: only padded rows, since adj carries
        # self-loops) have l == 0 -> clamp; their acc is 0 so the output stays 0.
        l = jnp.maximum(acc[:, fout_p:fout_p + 1], 1e-12)
        hp = acc[:, :fout_p] * pl.reciprocal(l, approx=True)
        # ELU (concat=True branch).
        out_ref[:, :fout_p] = jnp.where(hp > 0, hp, jnp.exp(jnp.minimum(hp, 0.0)) - 1.0)


# --------------------------------------------------------------------------- #
# Wrapper                                                                      #
# --------------------------------------------------------------------------- #
def gat_forward(h, adj, W, a, *, alpha=ALPHA, block_m=512, block_k=512,
                wh_resident=None):
    """GAT layer forward (eval mode).  h:[N,Fin], adj:[N,N], W:[Fin,Fout], a:[2*Fout,1]."""
    N, Fin = h.shape
    Fout = W.shape[1]

    # ---- lane/sublane padding (128 multiples) -------------------------------
    N_p = _round_up(N, 128)
    Fin_p = _round_up(Fin, 128)
    Fout_p = _round_up(Fout, 128)
    F_aug = Fout_p + 128                 # Wh lanes + [1 | 0...] column for the row-sum l

    bm = _pick_block(block_m, N_p)       # row (query-node) tile
    # Keep >=2 row tiles when possible: the row axis is the "parallel" (megacore)
    # axis, and a single row tile would leave one v7x TensorCore idle.
    while N_p // bm < 2 and bm > 128:
        bm = _pick_block(bm - 128, N_p)
    bk = _pick_block(block_k, N_p)       # column (neighbor-node) tile

    f32, bf16 = jnp.float32, jnp.bfloat16

    # ---- wrapper glue: fold attention projections into one augmented matmul --
    a1 = a[:Fout, 0]
    a2 = a[Fout:, 0]
    Waug = jnp.zeros((Fin_p, F_aug), f32)
    Waug = Waug.at[:Fin, :Fout].set(W.astype(f32))
    Waug = Waug.at[:Fin, Fout_p].set(W.astype(f32) @ a1)       # -> s1 = Wh . a[:F]
    Waug = Waug.at[:Fin, Fout_p + 1].set(W.astype(f32) @ a2)   # -> s2 = Wh . a[F:]
    Waug = Waug.astype(bf16)

    h_p = jnp.zeros((N_p, Fin_p), bf16).at[:N, :Fin].set(h.astype(bf16))
    # compact adjacency: int8 cuts the dominant N^2 HBM stream 4x vs f32
    adj_i8 = jnp.zeros((N_p, N_p), jnp.int8).at[:N, :N].set((adj > 0).astype(jnp.int8))

    n_row = N_p // bm
    n_col = N_p // bk

    # ---- kernel 1: [Wh|1|0..] (bf16) + attention scores (both layouts) -------
    wh_aug, s12, s2t = pl.pallas_call(
        functools.partial(_proj_kernel, fout_p=Fout_p),
        out_shape=(jax.ShapeDtypeStruct((N_p, F_aug), bf16),
                   jax.ShapeDtypeStruct((N_p, 128), f32),
                   jax.ShapeDtypeStruct((8, N_p), f32)),
        grid=(n_row,),
        in_specs=[pl.BlockSpec((bm, Fin_p), lambda i: (i, 0)),
                  pl.BlockSpec((Fin_p, F_aug), lambda i: (0, 0))],
        out_specs=(pl.BlockSpec((bm, F_aug), lambda i: (i, 0)),
                   pl.BlockSpec((bm, 128), lambda i: (i, 0)),
                   pl.BlockSpec((8, bm), lambda i: (0, i))),
        compiler_params=pltpu.CompilerParams(dimension_semantics=("parallel",)),
    )(h_p, Waug)

    # ---- kernel 2: masked online softmax + att @ Wh + ELU -------------------
    if wh_resident is None:
        # Resident copy is DMA'd once instead of re-streamed per row tile.
        # (x2 pipeline buffers, so cap at ~16 MiB of VMEM for this input.)
        wh_resident = N_p * F_aug * 2 <= 8 * 1024 * 1024
    if wh_resident:
        wh_spec = pl.BlockSpec((N_p, F_aug), lambda i, j: (0, 0))   # resident in VMEM
    else:
        wh_spec = pl.BlockSpec((bk, F_aug), lambda i, j: (j, 0))    # streamed per column tile

    out_p = pl.pallas_call(
        functools.partial(_attn_kernel, alpha=alpha, fout_p=Fout_p, bk=bk,
                          wh_resident=wh_resident),
        out_shape=jax.ShapeDtypeStruct((N_p, F_aug), f32),
        grid=(n_row, n_col),
        in_specs=[
            pl.BlockSpec((bm, 128), lambda i, j: (i, 0)),   # s12 (s1 in lane 0)
            pl.BlockSpec((8, bk), lambda i, j: (0, j)),     # s2 row-layout (lane-dense)
            pl.BlockSpec((bm, bk), lambda i, j: (i, j)),    # adjacency tile (int8)
            wh_spec,                                        # [Wh | 1 | 0...] (bf16)
        ],
        out_specs=pl.BlockSpec((bm, F_aug), lambda i, j: (i, 0)),
        scratch_shapes=[pltpu.VMEM((bm, 1), f32)],          # running max m
        compiler_params=pltpu.CompilerParams(
            dimension_semantics=("parallel", "arbitrary"),
            vmem_limit_bytes=32 * 1024 * 1024),
    )(s12, s2t, adj_i8, wh_aug)

    return out_p[:N, :Fout]


# --------------------------------------------------------------------------- #
# Reference + test                                                             #
# --------------------------------------------------------------------------- #
def _xavier_uniform(key, shape, gain):
    fan_in, fan_out = shape[0], shape[1]
    limit = gain * (6.0 / (fan_in + fan_out)) ** 0.5
    return jax.random.uniform(key, shape, jnp.float32, minval=-limit, maxval=limit)


def _reference(h, adj, W, a, fout):
    Wh = h @ W
    Wh1 = Wh @ a[:fout, :]
    Wh2 = Wh @ a[fout:, :]
    e = Wh1 + Wh2.T
    e = jnp.where(e > 0, e, ALPHA * e)
    att = jnp.where(adj > 0, e, NEG_BIG)
    att = jax.nn.softmax(att, axis=1)
    hp = att @ Wh
    return jnp.where(hp > 0, hp, jnp.exp(jnp.minimum(hp, 0.0)) - 1.0)


def _make_inputs(key, n, fin, fout):
    k_h, k_adj, k_w, k_a = jax.random.split(key, 4)
    h = jax.random.normal(k_h, (n, fin), jnp.float32)
    adj = (jax.random.uniform(k_adj, (n, n)) > 0.5).astype(jnp.float32)
    adj = jnp.maximum(adj, jnp.eye(n, dtype=jnp.float32))     # self-loops
    W = _xavier_uniform(k_w, (fin, fout), gain=1.414)
    a = _xavier_uniform(k_a, (2 * fout, 1), gain=1.414)
    return h, adj, W, a


if __name__ == "__main__":
    key = jax.random.PRNGKey(0)

    # -- small shape matching the module's intended use -----------------------
    N, IN_FEATURES, OUT_FEATURES = 8, 16, 32
    h, adj, W, a = _make_inputs(key, N, IN_FEATURES, OUT_FEATURES)
    out = gat_forward(h, adj, W, a)
    jax.block_until_ready(out)
    ref = _reference(h, adj, W, a, OUT_FEATURES)
    assert out.shape == (N, OUT_FEATURES)
    # bf16 MXU operands (f32 accumulation) => tolerance looser than pure-f32.
    assert jnp.allclose(out, ref, atol=1e-1, rtol=1e-1), "mismatch vs reference (small)"

    # -- multi-tile case: exercises the (rows x cols) grid + online softmax ---
    N2 = 300
    h2, adj2, W2, a2 = _make_inputs(jax.random.PRNGKey(1), N2, IN_FEATURES, OUT_FEATURES)
    ref2 = _reference(h2, adj2, W2, a2, OUT_FEATURES)

    out2 = gat_forward(h2, adj2, W2, a2, block_m=128, block_k=128)   # Wh resident path
    jax.block_until_ready(out2)
    assert out2.shape == (N2, OUT_FEATURES)
    assert jnp.allclose(out2, ref2, atol=1e-1, rtol=1e-1), "mismatch (tiled, resident Wh)"

    out3 = gat_forward(h2, adj2, W2, a2, block_m=128, block_k=128,
                       wh_resident=False)                            # streamed Wh path
    jax.block_until_ready(out3)
    assert jnp.allclose(out3, ref2, atol=1e-1, rtol=1e-1), "mismatch (tiled, streamed Wh)"

    print("KERNEL_OK")
</pallas_src>

<mosaic_0001>
module attributes {stable_mosaic.version = 11 : i64} {
  func.func @_proj_kernel(%arg0: i32, %arg1: memref<128x128xbf16, #tpu.memory_space<vmem>>, %arg2: memref<128x256xbf16, #tpu.memory_space<vmem>>, %arg3: memref<128x256xbf16, #tpu.memory_space<vmem>>, %arg4: memref<128x128xf32, #tpu.memory_space<vmem>>, %arg5: memref<8x128xf32, #tpu.memory_space<vmem>>) attributes {dimension_semantics = [#tpu.dimension_semantics<parallel>], iteration_bounds = array<i64: 1>, scalar_prefetch = 0 : i64, scratch_operands = 0 : i64, tpu.core_type = #tpu.core_type<tc>, window_params = [{transform_indices = @transform_0, window_bounds = array<i64: 128, 128>}, {pipeline_mode = #tpu.pipeline_mode<synchronous>, transform_indices = @transform_1, window_bounds = array<i64: 128, 256>}, {transform_indices = @transform_2, window_bounds = array<i64: 128, 256>}, {transform_indices = @transform_3, window_bounds = array<i64: 128, 128>}, {transform_indices = @transform_4, window_bounds = array<i64: 8, 128>}]} {
    %c0 = arith.constant 0 : index
    %c0_0 = arith.constant 0 : index
    %0 = vector.load %arg1[%c0, %c0_0] : memref<128x128xbf16, #tpu.memory_space<vmem>>, vector<128x128xbf16>
    %c0_1 = arith.constant 0 : index
    %c0_2 = arith.constant 0 : index
    %1 = vector.load %arg2[%c0_1, %c0_2] : memref<128x256xbf16, #tpu.memory_space<vmem>>, vector<128x256xbf16>
    %cst = arith.constant dense<0.000000e+00> : vector<128x256xf32>
    %2 = tpu.matmul %0, %1, %cst {dimension_numbers = #tpu.dot_dimension_numbers<[1], [0], [0], [1], [0, 0, 1, 1], [], []>} : vector<128x128xbf16>, vector<128x256xbf16>, vector<128x256xf32> -> vector<128x256xf32>
    %3 = vector.extract_strided_slice %2 {offsets = [0, 0], sizes = [128, 128], strides = [1, 1]} : vector<128x256xf32> to vector<128x128xf32>
    %4 = arith.truncf %3 : vector<128x128xf32> to vector<128x128xbf16>
    %c0_3 = arith.constant 0 : index
    %c0_4 = arith.constant 0 : index
    %5 = vector.load %arg3[%c0_3, %c0_4] : memref<128x256xbf16, #tpu.memory_space<vmem>>, vector<128x128xbf16>
    tpu.vector_store %arg3[%c0_3, %c0_4], %4 {strides = array<i32>} : memref<128x256xbf16, #tpu.memory_space<vmem>>, vector<128x128xbf16>,
    %6 = tpu.iota {dimensions = array<i32: 1>} : vector<128x128xi32>
    %c0_i32 = arith.constant 0 : i32
    %7 = vector.broadcast %c0_i32 : i32 to vector<128x128xi32>
    %8 = arith.cmpi eq, %6, %7 : vector<128x128xi32>
    %9 = arith.extui %8 : vector<128x128xi1> to vector<128x128xi32>
    %10 = arith.sitofp %9 : vector<128x128xi32> to vector<128x128xf32>
    %11 = arith.truncf %10 : vector<128x128xf32> to vector<128x128xbf16>
    %c0_5 = arith.constant 0 : index
    %c128 = arith.constant 128 : index
    %12 = vector.load %arg3[%c0_5, %c128] : memref<128x256xbf16, #tpu.memory_space<vmem>>, vector<128x128xbf16>
    tpu.vector_store %arg3[%c0_5, %c128], %11 {strides = array<i32>} : memref<128x256xbf16, #tpu.memory_space<vmem>>, vector<128x128xbf16>,
    %13 = vector.extract_strided_slice %2 {offsets = [0, 128], sizes = [128, 128], strides = [1, 1]} : vector<128x256xf32> to vector<128x128xf32>
    %c0_6 = arith.constant 0 : index
    %c0_7 = arith.constant 0 : index
    %14 = vector.load %arg4[%c0_6, %c0_7] : memref<128x128xf32, #tpu.memory_space<vmem>>, vector<128x128xf32>
    tpu.vector_store %arg4[%c0_6, %c0_7], %13 {strides = array<i32>} : memref<128x128xf32, #tpu.memory_space<vmem>>, vector<128x128xf32>,
    %15 = tpu.transpose %13, [1, 0] : vector<128x128xf32> -> vector<128x128xf32>
    %16 = vector.extract_strided_slice %15 {offsets = [0, 0], sizes = [8, 128], strides = [1, 1]} : vector<128x128xf32> to vector<8x128xf32>
    %c0_8 = arith.constant 0 : index
    %c0_9 = arith.constant 0 : index
    %17 = vector.load %arg5[%c0_8, %c0_9] : memref<8x128xf32, #tpu.memory_space<vmem>>, vector<8x128xf32>
    tpu.vector_store %arg5[%c0_8, %c0_9], %16 {strides = array<i32>} : memref<8x128xf32, #tpu.memory_space<vmem>>, vector<8x128xf32>,
    return
  }
  func.func @transform_0(%arg0: i32) -> (i32, i32) {
    %c0_i32 = arith.constant 0 : i32
    %c0_i32_0 = arith.constant 0 : i32
    return %arg0, %c0_i32 : i32, i32
  }
  func.func @transform_1(%arg0: i32) -> (i32, i32) {
    %c0_i32 = arith.constant 0 : i32
    %c0_i32_0 = arith.constant 0 : i32
    %c0_i32_1 = arith.constant 0 : i32
    return %c0_i32, %c0_i32_0 : i32, i32
  }
  func.func @transform_2(%arg0: i32) -> (i32, i32) {
    %c0_i32 = arith.constant 0 : i32
    %c0_i32_0 = arith.constant 0 : i32
    return %arg0, %c0_i32 : i32, i32
  }
  func.func @transform_3(%arg0: i32) -> (i32, i32) {
    %c0_i32 = arith.constant 0 : i32
    %c0_i32_0 = arith.constant 0 : i32
    return %arg0, %c0_i32 : i32, i32
  }
  func.func @transform_4(%arg0: i32) -> (i32, i32) {
    %c0_i32 = arith.constant 0 : i32
    %c0_i32_0 = arith.constant 0 : i32
    return %c0_i32, %arg0 : i32, i32
  }
}

</mosaic_0001>

<llo_original>
// kernel: tpu_custom_call.1
$region0: #{tpu_custom_call.1}
  #allocation0 [shape = 'u32[]', space=smem, size = 0x4, offset = 0x4, fixed_abs, tag = 'smem constant byte address 0x4 - core index']
  #allocation1 [shape = 'u32[144,128]{1,0:T(1,128)}', space=vmem, size = 0x12000, scoped, tag = 'internal scratch']
  %s0 = inlined_call_operand.hbm [shape: bf16[128,128], index: 0, kind: input, shape index: {}]
  %s1 = inlined_call_operand.hbm [shape: bf16[128,256], index: 1, kind: input, shape index: {}]
  %s2 = inlined_call_operand.hbm [shape: bf16[128,256], index: 2, kind: output, shape index: {0}]
  %s3 = inlined_call_operand.hbm [shape: f32[128,128], index: 3, kind: output, shape index: {1}]
  %s4 = inlined_call_operand.hbm [shape: f32[8,128], index: 4, kind: output, shape index: {2}]
  %5 = xla_tuple %s2, %s3, %s4
  %s6 = sld [smem:[#allocation0]]
  $region42: #{tpu_custom_call.1} parent=0
    _
  %s8 = ssub.s32 1, %s6
  %s9 = scalar_select 0, %s8, %s6
  $region1: #{tpu_custom_call.1} parent=0
    #allocation2 [shape = 'u8[32768]{0}', space=vmem, size = 0x8000, scoped, tag = 'input window, operand 0, single buffered']
    #allocation3 [shape = 's32[1]{0}', space=sflag, size = 0x4, scoped, tag = 'scoped memory for tpu_custom_call.1']
    #allocation4 [shape = 's32[1]{0}', space=sflag, size = 0x4, scoped, tag = 'scoped memory for tpu_custom_call.1']
    #allocation5 [shape = 'u8[65536]{0}', space=vmem, size = 0x10000, scoped, tag = 'input window, operand 1, single buffered']
    #allocation6 [shape = 's32[1]{0}', space=sflag, size = 0x4, scoped, tag = 'scoped memory for tpu_custom_call.1']
    #allocation7 [shape = 'u8[65536]{0}', space=vmem, size = 0x10000, scoped, tag = 'output window, operand 0, single buffered']
    #allocation8 [shape = 'u8[65536]{0}', space=vmem, size = 0x10000, scoped, tag = 'output window, operand 1, single buffered']
    #allocation9 [shape = 's32[1]{0}', space=sflag, size = 0x4, scoped, tag = 'scoped memory for tpu_custom_call.1']
    #allocation10 [shape = 'u8[4096]{0}', space=vmem, size = 0x1000, scoped, tag = 'output window, operand 2, single buffered']
    %10 = vsyncpa [#allocation3], 0
    %11 = vsyncpa [#allocation6], 0
    %12 = vsyncpa [#allocation4], 0
    %13 = vsyncpa [#allocation9], 0
    // Predicated region
    $region2: #{tpu_custom_call.1} parent=1 // pred_check
      _
    $region3: #{tpu_custom_call.1} parent=1 // pred_check_branch
      %15 = sbr.rel (0) target = $region5
    $region4: #{tpu_custom_call.1} parent=1 // pred_region
      %s17 = ssub.s32 1024, 1024
      %18 = vsyncadd [#allocation3], %s17
      %s19 = sshll.u32 [#allocation2], 4
      %s20 = int_to_ptr.vmem [resolvable:$true] %s19
      %25 = dma.hbm_to_vmem [thread:$0]  %s0, 1024, %s20, [#allocation3], 64, 64, 4
    $region5: #{tpu_custom_call.1} parent=1 // pred_fallthru
      _
    // Predicated region
    $region6: #{tpu_custom_call.1} parent=1 // pred_check
      _
    $region7: #{tpu_custom_call.1} parent=1 // pred_check_branch
      %27 = sbr.rel (0) target = $region9
    $region8: #{tpu_custom_call.1} parent=1 // pred_region
      %s29 = ssub.s32 2048, 2048
      %30 = vsyncadd [#allocation6], %s29
      %s31 = sshll.u32 [#allocation5], 4
      %s32 = int_to_ptr.vmem [resolvable:$true] %s31
      %37 = dma.hbm_to_vmem [thread:$0]  %s1, 2048, %s32, [#allocation6], 128, 128, 8
    $region9: #{tpu_custom_call.1} parent=1 // pred_fallthru
      _
    // Predicated region
    $region10: #{tpu_custom_call.1} parent=1 // pred_check
      _
    $region11: #{tpu_custom_call.1} parent=1 // pred_check_branch
      %39 = sbr.rel (0) target = $region13
    $region12: #{tpu_custom_call.1} parent=1 // pred_region
      %40 = dma.done [#allocation3], 1024
    $region13: #{tpu_custom_call.1} parent=1 // pred_fallthru
      _
    // Predicated region
    $region14: #{tpu_custom_call.1} parent=1 // pred_check
      _
    $region15: #{tpu_custom_call.1} parent=1 // pred_check_branch
      %42 = sbr.rel (0) target = $region17
    $region16: #{tpu_custom_call.1} parent=1 // pred_region
      %43 = dma.done [#allocation6], 2048
    $region17: #{tpu_custom_call.1} parent=1 // pred_fallthru
      _
    %v45 = vld [vmem:[#allocation2] sm:$0xf]
    %v46 = vld [vmem:[#allocation2 + $0x4] sm:$0xf]
    %v47 = vld [vmem:[#allocation2 + $0x8] sm:$0xf]
    %v48 = vld [vmem:[#allocation2 + $0xc] sm:$0xf]
    %v49 = vld [vmem:[#allocation2 + $0x10] sm:$0xf]
    %v50 = vld [vmem:[#allocation2 + $0x14] sm:$0xf]
    %v51 = vld [vmem:[#allocation2 + $0x18] sm:$0xf]
    %v52 = vld [vmem:[#allocation2 + $0x1c] sm:$0xf]
    %v53 = vld [vmem:[#allocation2 + $0x20] sm:$0xf]
    %v54 = vld [vmem:[#allocation2 + $0x24] sm:$0xf]
    %v55 = vld [vmem:[#allocation2 + $0x28] sm:$0xf]
    %v56 = vld [vmem:[#allocation2 + $0x2c] sm:$0xf]
    %v57 = vld [vmem:[#allocation2 + $0x30] sm:$0xf]
    %v58 = vld [vmem:[#allocation2 + $0x34] sm:$0xf]
    %v59 = vld [vmem:[#allocation2 + $0x38] sm:$0xf]
    %v60 = vld [vmem:[#allocation2 + $0x3c] sm:$0xf]
    %v61 = vld [vmem:[#allocation5] sm:$0xff]
    %v62 = vld [vmem:[#allocation5 + $0x8] sm:$0xff]
    %v63 = vld [vmem:[#allocation5 + $0x10] sm:$0xff]
    %v64 = vld [vmem:[#allocation5 + $0x18] sm:$0xff]
    %v65 = vld [vmem:[#allocation5 + $0x20] sm:$0xff]
    %v66 = vld [vmem:[#allocation5 + $0x28] sm:$0xff]
    %v67 = vld [vmem:[#allocation5 + $0x30] sm:$0xff]
    %v68 = vld [vmem:[#allocation5 + $0x38] sm:$0xff]
    %v69 = vld [vmem:[#allocation5 + $0x40] sm:$0xff]
    %v70 = vld [vmem:[#allocation5 + $0x48] sm:$0xff]
    %v71 = vld [vmem:[#allocation5 + $0x50] sm:$0xff]
    %v72 = vld [vmem:[#allocation5 + $0x58] sm:$0xff]
    %v73 = vld [vmem:[#allocation5 + $0x60] sm:$0xff]
    %v74 = vld [vmem:[#allocation5 + $0x68] sm:$0xff]
    %v75 = vld [vmem:[#allocation5 + $0x70] sm:$0xff]
    %v76 = vld [vmem:[#allocation5 + $0x78] sm:$0xff]
    %v93 = vunpack.c.l.b16 %v45
    %v94 = vunpack.c.l.b16 %v46
    %v95 = vunpack.c.l.b16 %v47
    %v96 = vunpack.c.l.b16 %v48
    %v97 = vunpack.c.l.b16 %v49
    %v98 = vunpack.c.l.b16 %v50
    %v99 = vunpack.c.l.b16 %v51
    %v100 = vunpack.c.l.b16 %v52
    %v101 = vunpack.c.l.b16 %v53
    %v102 = vunpack.c.l.b16 %v54
    %v103 = vunpack.c.l.b16 %v55
    %v104 = vunpack.c.l.b16 %v56
    %v105 = vunpack.c.l.b16 %v57
    %v106 = vunpack.c.l.b16 %v58
    %v107 = vunpack.c.l.b16 %v59
    %v108 = vunpack.c.l.b16 %v60
    %v109 = vpack.c.b16 %v94, %v93
    %v110 = vpack.c.b16 %v96, %v95
    %v111 = vpack.c.b16 %v98, %v97
    %v112 = vpack.c.b16 %v100, %v99
    %v113 = vpack.c.b16 %v102, %v101
    %v114 = vpack.c.b16 %v104, %v103
    %v115 = vpack.c.b16 %v106, %v105
    %v116 = vpack.c.b16 %v108, %v107
    %v141 = vunpack.c.l.b16 %v61
    %v142 = vunpack.c.h.b16 %v61
    %v143 = vunpack.c.l.b16 %v62
    %v144 = vunpack.c.h.b16 %v62
    %v145 = vunpack.c.l.b16 %v63
    %v146 = vunpack.c.h.b16 %v63
    %v147 = vunpack.c.l.b16 %v64
    %v148 = vunpack.c.h.b16 %v64
    %v149 = vunpack.c.l.b16 %v65
    %v150 = vunpack.c.h.b16 %v65
    %v151 = vunpack.c.l.b16 %v66
    %v152 = vunpack.c.h.b16 %v66
    %v153 = vunpack.c.l.b16 %v67
    %v154 = vunpack.c.h.b16 %v67
    %v155 = vunpack.c.l.b16 %v68
    %v156 = vunpack.c.h.b16 %v68
    %v157 = vunpack.c.l.b16 %v69
    %v158 = vunpack.c.h.b16 %v69
    %v159 = vunpack.c.l.b16 %v70
    %v160 = vunpack.c.h.b16 %v70
    %v161 = vunpack.c.l.b16 %v71
    %v162 = vunpack.c.h.b16 %v71
    %v163 = vunpack.c.l.b16 %v72
    %v164 = vunpack.c.h.b16 %v72
    %v165 = vunpack.c.l.b16 %v73
    %v166 = vunpack.c.h.b16 %v73
    %v167 = vunpack.c.l.b16 %v74
    %v168 = vunpack.c.h.b16 %v74
    %v169 = vunpack.c.l.b16 %v75
    %v170 = vunpack.c.h.b16 %v75
    %v171 = vunpack.c.l.b16 %v76
    %v172 = vunpack.c.h.b16 %v76
    %v173 = vpack.c.b16 %v143, %v141
    %v174 = vpack.c.b16 %v144, %v142
    %v175 = vpack.c.b16 %v147, %v145
    %v176 = vpack.c.b16 %v148, %v146
    %v177 = vpack.c.b16 %v151, %v149
    %v178 = vpack.c.b16 %v152, %v150
    %v179 = vpack.c.b16 %v155, %v153
    %v180 = vpack.c.b16 %v156, %v154
    %v181 = vpack.c.b16 %v159, %v157
    %v182 = vpack.c.b16 %v160, %v158
    %v183 = vpack.c.b16 %v163, %v161
    %v184 = vpack.c.b16 %v164, %v162
    %v185 = vpack.c.b16 %v167, %v165
    %v186 = vpack.c.b16 %v168, %v166
    %v187 = vpack.c.b16 %v171, %v169
    %v188 = vpack.c.b16 %v172, %v170
    %205 = vmatprep.subr.bf16.mxu0 %v174
    %206 = vmatpush1.bf16.msra.mxu0 %v173
    %207 = vmatprep.subr.bf16.mxu0 %v176
    %208 = vmatpush1.bf16.msra.mxu0 %v175
    %209 = vmatprep.subr.bf16.mxu0 %v178
    %210 = vmatpush1.bf16.msra.mxu0 %v177
    %211 = vmatprep.subr.bf16.mxu0 %v180
    %212 = vmatpush1.bf16.msra.mxu0 %v179
    %213 = vmatprep.subr.bf16.mxu0 %v182
    %214 = vmatpush1.bf16.msra.mxu0 %v181
    %215 = vmatprep.subr.bf16.mxu0 %v184
    %216 = vmatpush1.bf16.msra.mxu0 %v183
    %217 = vmatprep.subr.bf16.mxu0 %v186
    %218 = vmatpush1.bf16.msra.mxu0 %v185
    %219 = vmatprep.subr.bf16.mxu0 %v188
    %220 = vmatpush1.bf16.msra.mxu0 %v187
    %221 = vmatprep.subr.bf16.mxu0 0
    %222 = vmatpush1.bf16.msra.mxu0 0
    %223 = vmatprep.subr.bf16.mxu0 0
    %224 = vmatpush1.bf16.msra.mxu0 0
    %225 = vmatprep.subr.bf16.mxu0 0
    %226 = vmatpush1.bf16.msra.mxu0 0
    %227 = vmatprep.subr.bf16.mxu0 0
    %228 = vmatpush1.bf16.msra.mxu0 0
    %229 = vmatprep.subr.bf16.mxu0 0
    %230 = vmatpush1.bf16.msra.mxu0 0
    %231 = vmatprep.subr.bf16.mxu0 0
    %232 = vmatpush1.bf16.msra.mxu0 0
    %233 = vmatprep.subr.bf16.mxu0 0
    %234 = vmatpush1.bf16.msra.mxu0 0
    %235 = vmatprep.subr.bf16.mxu0 0
    %236 = vmatpush1.bf16.msra.mxu0 0
    %237 = vmatprep.mubr.bf16.mxu0 0
    %238 = vmatmul.mubr.bf16.gmra.mrb[0].mxu0 %v109
    %v239 = vpop.f32.mrb[0].mxu0
    %v240 = vadd.f32 0.0, %v239
    %v241 = vpop.f32.mrb[0].mxu0
    %v242 = vadd.f32 0.0, %v241
    %v243 = vpop.f32.mrb[0].mxu0
    %v244 = vadd.f32 0.0, %v243
    %v245 = vpop.f32.mrb[0].mxu0
    %v246 = vadd.f32 0.0, %v245
    %247 = vmatprep.mubr.bf16.mxu0 0
    %248 = vmatmul.mubr.bf16.gmra.mrb[0].mxu0 %v110
    %v249 = vpop.f32.mrb[0].mxu0
    %v250 = vadd.f32 0.0, %v249
    %v251 = vpop.f32.mrb[0].mxu0
    %v252 = vadd.f32 0.0, %v251
    %v253 = vpop.f32.mrb[0].mxu0
    %v254 = vadd.f32 0.0, %v253
    %v255 = vpop.f32.mrb[0].mxu0
    %v256 = vadd.f32 0.0, %v255
    %257 = vmatprep.mubr.bf16.mxu0 0
    %258 = vmatmul.mubr.bf16.gmra.mrb[0].mxu0 %v111
    %v259 = vpop.f32.mrb[0].mxu0
    %v260 = vadd.f32 0.0, %v259
    %v261 = vpop.f32.mrb[0].mxu0
    %v262 = vadd.f32 0.0, %v261
    %v263 = vpop.f32.mrb[0].mxu0
    %v264 = vadd.f32 0.0, %v263
    %v265 = vpop.f32.mrb[0].mxu0
    %v266 = vadd.f32 0.0, %v265
    %267 = vmatprep.mubr.bf16.mxu0 0
    %268 = vmatmul.mubr.bf16.gmra.mrb[0].mxu0 %v112
    %v269 = vpop.f32.mrb[0].mxu0
    %v270 = vadd.f32 0.0, %v269
    %v271 = vpop.f32.mrb[0].mxu0
    %v272 = vadd.f32 0.0, %v271
    %v273 = vpop.f32.mrb[0].mxu0
    %v274 = vadd.f32 0.0, %v273
    %v275 = vpop.f32.mrb[0].mxu0
    %v276 = vadd.f32 0.0, %v275
    %277 = vmatprep.mubr.bf16.mxu0 0
    %278 = vmatmul.mubr.bf16.gmra.mrb[0].mxu0 %v113
    %v279 = vpop.f32.mrb[0].mxu0
    %v280 = vadd.f32 0.0, %v279
    %v281 = vpop.f32.mrb[0].mxu0
    %v282 = vadd.f32 0.0, %v281
    %v283 = vpop.f32.mrb[0].mxu0
    %v284 = vadd.f32 0.0, %v283
    %v285 = vpop.f32.mrb[0].mxu0
    %v286 = vadd.f32 0.0, %v285
    %287 = vmatprep.mubr.bf16.mxu0 0
    %288 = vmatmul.mubr.bf16.gmra.mrb[0].mxu0 %v114
    %v289 = vpop.f32.mrb[0].mxu0
    %v290 = vadd.f32 0.0, %v289
    %v291 = vpop.f32.mrb[0].mxu0
    %v292 = vadd.f32 0.0, %v291
    %v293 = vpop.f32.mrb[0].mxu0
    %v294 = vadd.f32 0.0, %v293
    %v295 = vpop.f32.mrb[0].mxu0
    %v296 = vadd.f32 0.0, %v295
    %297 = vmatprep.mubr.bf16.mxu0 0
    %298 = vmatmul.mubr.bf16.gmra.mrb[0].mxu0 %v115
    %v299 = vpop.f32.mrb[0].mxu0
    %v300 = vadd.f32 0.0, %v299
    %v301 = vpop.f32.mrb[0].mxu0
    %v302 = vadd.f32 0.0, %v301
    %v303 = vpop.f32.mrb[0].mxu0
    %v304 = vadd.f32 0.0, %v303
    %v305 = vpop.f32.mrb[0].mxu0
    %v306 = vadd.f32 0.0, %v305
    %307 = vmatprep.mubr.bf16.mxu0 0
    %308 = vmatmul.mubr.bf16.gmra.mrb[0].mxu0 %v116
    %v309 = vpop.f32.mrb[0].mxu0
    %v310 = vadd.f32 0.0, %v309
    %v311 = vpop.f32.mrb[0].mxu0
    %v312 = vadd.f32 0.0, %v311
    %v313 = vpop.f32.mrb[0].mxu0
    %v314 = vadd.f32 0.0, %v313
    %v315 = vpop.f32.mrb[0].mxu0
    %v316 = vadd.f32 0.0, %v315
    %317 = vdwg.mxu0
    %v318 = vpack.c.bf16 %v244, %v240
    %v319 = vpack.c.bf16 %v254, %v250
    %v320 = vpack.c.bf16 %v264, %v260
    %v321 = vpack.c.bf16 %v274, %v270
    %v322 = vpack.c.bf16 %v284, %v280
    %v323 = vpack.c.bf16 %v294, %v290
    %v324 = vpack.c.bf16 %v304, %v300
    %v325 = vpack.c.bf16 %v314, %v310
    %v334 = vunpack.c.l.b16 %v318
    %v335 = vunpack.c.h.b16 %v318
    %v336 = vunpack.c.l.b16 %v319
    %v337 = vunpack.c.h.b16 %v319
    %v338 = vunpack.c.l.b16 %v320
    %v339 = vunpack.c.h.b16 %v320
    %v340 = vunpack.c.l.b16 %v321
    %v341 = vunpack.c.h.b16 %v321
    %v342 = vunpack.c.l.b16 %v322
    %v343 = vunpack.c.h.b16 %v322
    %v344 = vunpack.c.l.b16 %v323
    %v345 = vunpack.c.h.b16 %v323
    %v346 = vunpack.c.l.b16 %v324
    %v347 = vunpack.c.h.b16 %v324
    %v348 = vunpack.c.l.b16 %v325
    %v349 = vunpack.c.h.b16 %v325
    %v350 = vpack.c.b16 %v334, %v334
    %v351 = vpack.c.b16 %v335, %v335
    %v352 = vpack.c.b16 %v336, %v336
    %v353 = vpack.c.b16 %v337, %v337
    %v354 = vpack.c.b16 %v338, %v338
    %v355 = vpack.c.b16 %v339, %v339
    %v356 = vpack.c.b16 %v340, %v340
    %v357 = vpack.c.b16 %v341, %v341
    %v358 = vpack.c.b16 %v342, %v342
    %v359 = vpack.c.b16 %v343, %v343
    %v360 = vpack.c.b16 %v344, %v344
    %v361 = vpack.c.b16 %v345, %v345
    %v362 = vpack.c.b16 %v346, %v346
    %v363 = vpack.c.b16 %v347, %v347
    %v364 = vpack.c.b16 %v348, %v348
    %v365 = vpack.c.b16 %v349, %v349
    %382 = vst [vmem:[#allocation7] sm:$0xf] %v350
    %383 = vst [vmem:[#allocation7 + $0x8] sm:$0xf] %v351
    %384 = vst [vmem:[#allocation7 + $0x10] sm:$0xf] %v352
    %385 = vst [vmem:[#allocation7 + $0x18] sm:$0xf] %v353
    %386 = vst [vmem:[#allocation7 + $0x20] sm:$0xf] %v354
    %387 = vst [vmem:[#allocation7 + $0x28] sm:$0xf] %v355
    %388 = vst [vmem:[#allocation7 + $0x30] sm:$0xf] %v356
    %389 = vst [vmem:[#allocation7 + $0x38] sm:$0xf] %v357
    %390 = vst [vmem:[#allocation7 + $0x40] sm:$0xf] %v358
    %391 = vst [vmem:[#allocation7 + $0x48] sm:$0xf] %v359
    %392 = vst [vmem:[#allocation7 + $0x50] sm:$0xf] %v360
    %393 = vst [vmem:[#allocation7 + $0x58] sm:$0xf] %v361
    %394 = vst [vmem:[#allocation7 + $0x60] sm:$0xf] %v362
    %395 = vst [vmem:[#allocation7 + $0x68] sm:$0xf] %v363
    %396 = vst [vmem:[#allocation7 + $0x70] sm:$0xf] %v364
    %397 = vst [vmem:[#allocation7 + $0x78] sm:$0xf] %v365
    %v398 = vlaneseq
    %v399 = vand.u32 %v398, 127
    %vm400 = vcmp.eq.s32.totalorder %v399, 0
    %v401 = vsel %vm400, 1, 0
    %v402 = vcvt.s32.f32 %v401
    %v403 = vpack.c.bf16 %v402, %v402
    %v405 = vunpack.c.l.b16 %v403
    %v406 = vpack.c.b16 %v405, %v405
    %408 = vst [vmem:[#allocation7 + $0x4] sm:$0xf] %v406
    %409 = vst [vmem:[#allocation7 + $0xc] sm:$0xf] %v406
    %410 = vst [vmem:[#allocation7 + $0x14] sm:$0xf] %v406
    %411 = vst [vmem:[#allocation7 + $0x1c] sm:$0xf] %v406
    %412 = vst [vmem:[#allocation7 + $0x24] sm:$0xf] %v406
    %413 = vst [vmem:[#allocation7 + $0x2c] sm:$0xf] %v406
    %414 = vst [vmem:[#allocation7 + $0x34] sm:$0xf] %v406
    %415 = vst [vmem:[#allocation7 + $0x3c] sm:$0xf] %v406
    %416 = vst [vmem:[#allocation7 + $0x44] sm:$0xf] %v406
    %417 = vst [vmem:[#allocation7 + $0x4c] sm:$0xf] %v406
    %418 = vst [vmem:[#allocation7 + $0x54] sm:$0xf] %v406
    %419 = vst [vmem:[#allocation7 + $0x5c] sm:$0xf] %v406
    %420 = vst [vmem:[#allocation7 + $0x64] sm:$0xf] %v406
    %421 = vst [vmem:[#allocation7 + $0x6c] sm:$0xf] %v406
    %422 = vst [vmem:[#allocation7 + $0x74] sm:$0xf] %v406
    %423 = vst [vmem:[#allocation7 + $0x7c] sm:$0xf] %v406
    %424 = vst [vmem:[#allocation8] sm:$0xff] %v242
    %425 = vst [vmem:[#allocation8 + $0x8] sm:$0xff] %v246
    %426 = vst [vmem:[#allocation8 + $0x10] sm:$0xff] %v252
    %427 = vst [vmem:[#allocation8 + $0x18] sm:$0xff] %v256
    %428 = vst [vmem:[#allocation8 + $0x20] sm:$0xff] %v262
    %429 = vst [vmem:[#allocation8 + $0x28] sm:$0xff] %v266
    %430 = vst [vmem:[#allocation8 + $0x30] sm:$0xff] %v272
    %431 = vst [vmem:[#allocation8 + $0x38] sm:$0xff] %v276
    %432 = vst [vmem:[#allocation8 + $0x40] sm:$0xff] %v282
    %433 = vst [vmem:[#allocation8 + $0x48] sm:$0xff] %v286
    %434 = vst [vmem:[#allocation8 + $0x50] sm:$0xff] %v292
    %435 = vst [vmem:[#allocation8 + $0x58] sm:$0xff] %v296
    %436 = vst [vmem:[#allocation8 + $0x60] sm:$0xff] %v302
    %437 = vst [vmem:[#allocation8 + $0x68] sm:$0xff] %v306
    %438 = vst [vmem:[#allocation8 + $0x70] sm:$0xff] %v312
    %439 = vst [vmem:[#allocation8 + $0x78] sm:$0xff] %v316
    %440 = vxpose.xlu0.b32.start [1/16] %v242, 128
    %441 = vxpose.xlu0.b32.cont [2/16] %v246, 128
    %442 = vxpose.xlu0.b32.cont [3/16] %v252, 128
    %443 = vxpose.xlu0.b32.cont [4/16] %v256, 128
    %444 = vxpose.xlu0.b32.cont [5/16] %v262, 128
    %445 = vxpose.xlu0.b32.cont [6/16] %v266, 128
    %446 = vxpose.xlu0.b32.cont [7/16] %v272, 128
    %447 = vxpose.xlu0.b32.cont [8/16] %v276, 128
    %448 = vxpose.xlu0.b32.cont [9/16] %v282, 128
    %449 = vxpose.xlu0.b32.cont [10/16] %v286, 128
    %450 = vxpose.xlu0.b32.cont [11/16] %v292, 128
    %451 = vxpose.xlu0.b32.cont [12/16] %v296, 128
    %452 = vxpose.xlu0.b32.cont [13/16] %v302, 128
    %453 = vxpose.xlu0.b32.cont [14/16] %v306, 128
    %454 = vxpose.xlu0.b32.cont [15/16] %v312, 128
    %455 = vxpose.xlu0.b32.end [16/16] %v316, 128
    %v456 = vpop.trf.xlu0
    %v457 = vpop.trf.xlu0
    %v458 = vpop.trf.xlu0
    %v459 = vpop.trf.xlu0
    %v460 = vpop.trf.xlu0
    %v461 = vpop.trf.xlu0
    %v462 = vpop.trf.xlu0
    %v463 = vpop.trf.xlu0
    %v464 = vpop.trf.xlu0
    %v465 = vpop.trf.xlu0
    %v466 = vpop.trf.xlu0
    %v467 = vpop.trf.xlu0
    %v468 = vpop.trf.xlu0
    %v469 = vpop.trf.xlu0
    %v470 = vpop.trf.xlu0
    %v471 = vpop.trf.xlu0
    %472 = vst [vmem:[#allocation10] sm:$0xff] %v456
    // Predicated region
    $region18: #{tpu_custom_call.1} parent=1 // pred_check
      _
    $region19: #{tpu_custom_call.1} parent=1 // pred_check_branch
      %474 = sbr.rel (0) target = $region21
    $region20: #{tpu_custom_call.1} parent=1 // pred_region
      %s476 = ssub.s32 2048, 2048
      %477 = vsyncadd [#allocation4], %s476
      %s478 = sshll.u32 [#allocation7], 4
      %s479 = int_to_ptr.vmem [resolvable:$true] %s478
      %484 = dma.vmem_to_hbm [thread:$0]  %s479, 2048, %s2, [#allocation4], 128, 128, 8
    $region21: #{tpu_custom_call.1} parent=1 // pred_fallthru
      _
    // Predicated region
    $region22: #{tpu_custom_call.1} parent=1 // pred_check
      _
    $region23: #{tpu_custom_call.1} parent=1 // pred_check_branch
      %486 = sbr.rel (0) target = $region25
    $region24: #{tpu_custom_call.1} parent=1 // pred_region
      %s488 = ssub.s32 2048, 2048
      %489 = vsyncadd [#allocation9], %s488
      %s490 = sshll.u32 [#allocation8], 4
      %s491 = int_to_ptr.vmem [resolvable:$true] %s490
      %496 = dma.vmem_to_hbm [thread:$0]  %s491, 2048, %s3, [#allocation9], 128, 128, 8
    $region25: #{tpu_custom_call.1} parent=1 // pred_fallthru
      _
    // Predicated region
    $region26: #{tpu_custom_call.1} parent=1 // pred_check
      _
    $region27: #{tpu_custom_call.1} parent=1 // pred_check_branch
      %498 = sbr.rel (0) target = $region29
    $region28: #{tpu_custom_call.1} parent=1 // pred_region
      %s500 = ssub.s32 128, 128
      %501 = vsyncadd [#allocation9], %s500
      %s503 = sshll.u32 [#allocation10], 4
      %s504 = int_to_ptr.vmem [resolvable:$true] %s503
      %506 = dma.vmem_to_hbm [thread:$0]  %s504, 128, %s4, [#allocation9]
    $region29: #{tpu_custom_call.1} parent=1 // pred_fallthru
      _
    // Predicated region
    $region30: #{tpu_custom_call.1} parent=1 // pred_check
      _
    $region31: #{tpu_custom_call.1} parent=1 // pred_check_branch
      %508 = sbr.rel (0) target = $region33
    $region32: #{tpu_custom_call.1} parent=1 // pred_region
      %509 = dma.done [#allocation4], 2048
    $region33: #{tpu_custom_call.1} parent=1 // pred_fallthru
      _
    // Predicated region
    $region34: #{tpu_custom_call.1} parent=1 // pred_check
      _
    $region35: #{tpu_custom_call.1} parent=1 // pred_check_branch
      %511 = sbr.rel (0) target = $region37
    $region36: #{tpu_custom_call.1} parent=1 // pred_region
      %512 = dma.done [#allocation9], 2048
    $region37: #{tpu_custom_call.1} parent=1 // pred_fallthru
      _
    // Predicated region
    $region38: #{tpu_custom_call.1} parent=1 // pred_check
      _
    $region39: #{tpu_custom_call.1} parent=1 // pred_check_branch
      %514 = sbr.rel (0) target = $region41
    $region40: #{tpu_custom_call.1} parent=1 // pred_region
      %515 = dma.done [#allocation9], 128
    $region41: #{tpu_custom_call.1} parent=1 // pred_fallthru
      _
    %516 = vsyncpa [#allocation3], 1
    %517 = vsyncpa [#allocation6], 1
    %518 = vsyncpa [#allocation4], 1
    %519 = vsyncpa [#allocation9], 1

</llo_original>
